<compile_context>
chip_gen: v5e
topology: v5e:2x2
jax: 0.10.0
libtpu: 0.0.40
codegen_flags: <defaults>
</compile_context>

<pallas_src>
import jax
import jax.numpy as jnp
from jax import lax
from jax.experimental import pallas as pl
from jax.experimental.pallas import tpu as pltpu

_BN_EPS = 1e-5


# ---------------------------------------------------------------------------
# Kernel: one grid step == one OffsetAttention layer (+ its slice of the
# final Linear, folded into the output accumulator).
# ---------------------------------------------------------------------------
def _pct_layer_kernel(x_ref, wqkv_ref, bqkv_ref, wl_ref, bl_ref,
                      gamma_ref, beta_ref, wout_ref, bout_ref,
                      out_ref, f_ref, fbf_ref):
    l = pl.program_id(0)
    B, N, D = f_ref.shape
    LD = out_ref.shape[2]
    E = wqkv_ref.shape[2]          # 2*H + D (fused q/k/v weight slab)
    H = (E - D) // 2
    R = B * N                      # flattened row count

    @pl.when(l == 0)
    def _init():
        x = x_ref[...]
        f_ref[...] = x                                   # running activation (f32)
        fbf_ref[...] = x.astype(jnp.bfloat16)            # bf16 copy for MXU
        out_ref[...] = jnp.broadcast_to(bout_ref[...], out_ref.shape)   # bias once

    f = f_ref[...]                                       # (B, N, D) f32
    f_bf = fbf_ref[...].reshape(R, D)                    # (R, D) bf16, cast once/layer

    # Fused q/k/v projection: single flat 2-D matmul (bf16 in, f32 acc).
    qkv = jnp.dot(f_bf, wqkv_ref[0],
                  preferred_element_type=jnp.float32) + bqkv_ref[0]      # (R, E)
    qkv = qkv.reshape(B, N, E)
    q = qkv[:, :, :H]
    k = qkv[:, :, H:2 * H]
    v = qkv[:, :, 2 * H:]

    # Attention scores (B, N_q, N_k) — genuinely batched matmul.
    a = jnp.einsum('bnh,bmh->bnm',
                   q.astype(jnp.bfloat16), k.astype(jnp.bfloat16),
                   preferred_element_type=jnp.float32)
    # softmax over dim=1 (query axis), exact division.
    a = jnp.exp(a - jnp.max(a, axis=1, keepdims=True))
    a = a / jnp.sum(a, axis=1, keepdims=True)
    # L1 normalization over dim=2 (approx reciprocal: EUP slot, off the VALU path).
    a = a * pl.reciprocal(jnp.sum(a, axis=2, keepdims=True), approx=True)

    f_sa = jnp.einsum('bnm,bmd->bnd',
                      a.astype(jnp.bfloat16), v.astype(jnp.bfloat16),
                      preferred_element_type=jnp.float32)                # (B, N, D)

    # LBR: Linear -> BatchNorm1d (training-mode stats over all B*N rows) -> ReLU.
    diff = (f - f_sa).reshape(R, D).astype(jnp.bfloat16)
    y = jnp.dot(diff, wl_ref[0], preferred_element_type=jnp.float32) + bl_ref[0]
    mean = jnp.mean(y, axis=0, keepdims=True)                            # (1, D)
    var = jnp.mean((y - mean) ** 2, axis=0, keepdims=True)               # biased var
    yn = (y - mean) * lax.rsqrt(var + _BN_EPS) * gamma_ref[0] + beta_ref[0]

    f_new = jnp.maximum(yn, 0.0).reshape(B, N, D) + f_sa                 # (B, N, D)
    f_new_bf = f_new.astype(jnp.bfloat16)                                # cast once
    f_ref[...] = f_new
    fbf_ref[...] = f_new_bf

    # Fold this layer's slice of the output Linear: out += f_l @ w_out[l*D:(l+1)*D, :]
    delta = jnp.dot(f_new_bf.reshape(R, D), wout_ref[0],
                    preferred_element_type=jnp.float32)
    out_ref[...] = out_ref[...] + delta.reshape(B, N, LD)


# ---------------------------------------------------------------------------
# Wrapper: pack per-layer weights (bf16 slabs) and launch the layer-gridded kernel
# ---------------------------------------------------------------------------
def pack_pct_params(params):
    layers = params["layers"]
    L = len(layers)
    D = layers[0]["wv"].shape[0]
    wqkv = jnp.stack([jnp.concatenate([lp["wq"], lp["wk"], lp["wv"]], axis=1)
                      for lp in layers])                            # (L, D, 2H+D)
    bqkv = jnp.stack([jnp.concatenate([lp["bq"], lp["bk"], lp["bv"]], axis=1)
                      for lp in layers])                            # (L, 1, 2H+D)
    return dict(
        wqkv=wqkv.astype(jnp.bfloat16),                             # MXU operands pre-cast
        bqkv=bqkv,                                                  # f32
        wl=jnp.stack([lp["wl"] for lp in layers]).astype(jnp.bfloat16),   # (L, D, D)
        bl=jnp.stack([lp["bl"] for lp in layers]),                  # (L, 1, D) f32
        gamma=jnp.stack([lp["gamma"] for lp in layers]),            # (L, 1, D) f32
        beta=jnp.stack([lp["beta"] for lp in layers]),              # (L, 1, D) f32
        wout=params["w_out"].reshape(L, D, L * D).astype(jnp.bfloat16),   # (L, D, L*D)
        bout=params["b_out"].reshape(1, 1, L * D),                  # (1, 1, L*D) f32
    )


def pct_encoder(f_e, packed):
    B, N, D = f_e.shape
    L, _, E = packed["wqkv"].shape
    LD = L * D
    args = (f_e, packed["wqkv"], packed["bqkv"], packed["wl"], packed["bl"],
            packed["gamma"], packed["beta"], packed["wout"], packed["bout"])

    in_specs = [
        pl.BlockSpec((B, N, D), lambda l: (0, 0, 0)),       # f_e (resident)
        pl.BlockSpec((1, D, E), lambda l: (l, 0, 0)),       # wqkv  (per-layer, pipelined)
        pl.BlockSpec((1, 1, E), lambda l: (l, 0, 0)),       # bqkv
        pl.BlockSpec((1, D, D), lambda l: (l, 0, 0)),       # wl
        pl.BlockSpec((1, 1, D), lambda l: (l, 0, 0)),       # bl
        pl.BlockSpec((1, 1, D), lambda l: (l, 0, 0)),       # gamma
        pl.BlockSpec((1, 1, D), lambda l: (l, 0, 0)),       # beta
        pl.BlockSpec((1, D, LD), lambda l: (l, 0, 0)),      # wout block
        pl.BlockSpec((1, 1, LD), lambda l: (0, 0, 0)),      # bout (resident)
    ]
    out_spec = pl.BlockSpec((B, N, LD), lambda l: (0, 0, 0))  # accumulator across layers

    return pl.pallas_call(
        _pct_layer_kernel,
        out_shape=jax.ShapeDtypeStruct((B, N, LD), jnp.float32),
        grid_spec=pltpu.PrefetchScalarGridSpec(
            num_scalar_prefetch=0,
            grid=(L,),
            in_specs=in_specs,
            out_specs=out_spec,
            scratch_shapes=[pltpu.VMEM((B, N, D), jnp.float32),    # running f
                            pltpu.VMEM((B, N, D), jnp.bfloat16)],  # running f (bf16)
        ),
        compiler_params=pltpu.CompilerParams(
            dimension_semantics=("arbitrary",),        # layers are sequentially dependent
            vmem_limit_bytes=32 * 1024 * 1024,
        ),
    )(*args)


# ---------------------------------------------------------------------------
# Parameter initialization (deterministic, PyTorch-style uniform init)
# ---------------------------------------------------------------------------
def _linear_init(key, fan_in, fan_out):
    kw, kb = jax.random.split(key)
    bound = 1.0 / (fan_in ** 0.5)
    w = jax.random.uniform(kw, (fan_in, fan_out), jnp.float32, -bound, bound)
    b = jax.random.uniform(kb, (1, fan_out), jnp.float32, -bound, bound)
    return w, b


def init_pct_encoder_params(key, num_layers, embed_dim, hidden_dim):
    layers = []
    keys = jax.random.split(key, num_layers + 1)
    for li in range(num_layers):
        kq, kk, kv, kl = jax.random.split(keys[li], 4)
        wq, bq = _linear_init(kq, embed_dim, hidden_dim)
        wk, bk = _linear_init(kk, embed_dim, hidden_dim)
        wv, bv = _linear_init(kv, embed_dim, embed_dim)
        wl, bl = _linear_init(kl, embed_dim, embed_dim)
        layers.append(dict(
            wq=wq, bq=bq, wk=wk, bk=bk, wv=wv, bv=bv, wl=wl, bl=bl,
            gamma=jnp.ones((1, embed_dim), jnp.float32),   # BatchNorm1d weight
            beta=jnp.zeros((1, embed_dim), jnp.float32),   # BatchNorm1d bias
        ))
    w_out, b_out = _linear_init(keys[-1], num_layers * embed_dim, num_layers * embed_dim)
    return dict(layers=layers, w_out=w_out, b_out=b_out)


# ---------------------------------------------------------------------------
# Pure-JAX reference (f32) for correctness checking
# ---------------------------------------------------------------------------
def _pct_encoder_ref(f_e, params):
    f = f_e
    outs = []
    for lp in params["layers"]:
        q = f @ lp["wq"] + lp["bq"]
        k = f @ lp["wk"] + lp["bk"]
        v = f @ lp["wv"] + lp["bv"]
        a = jnp.einsum('bnh,bmh->bnm', q, k)
        a = jax.nn.softmax(a, axis=1)
        a = a / jnp.sum(a, axis=2, keepdims=True)
        f_sa = jnp.einsum('bnm,bmd->bnd', a, v)
        y = (f - f_sa) @ lp["wl"] + lp["bl"]
        mean = jnp.mean(y, axis=(0, 1), keepdims=True)
        var = jnp.mean((y - mean) ** 2, axis=(0, 1), keepdims=True)
        yn = (y - mean) / jnp.sqrt(var + _BN_EPS) * lp["gamma"] + lp["beta"]
        f = jnp.maximum(yn, 0.0) + f_sa
        outs.append(f)
    f_cat = jnp.concatenate(outs, axis=2)
    return f_cat @ params["w_out"] + params["b_out"]


if __name__ == "__main__":
    # Small shapes consistent with the module: (B, N, embed_dim)
    B, N = 2, 8
    num_layers, embed_dim, hidden_dim = 4, 32, 8

    key = jax.random.PRNGKey(0)
    k_params, k_input = jax.random.split(key)
    params = init_pct_encoder_params(k_params, num_layers, embed_dim, hidden_dim)
    f_e = jax.random.normal(k_input, (B, N, embed_dim), jnp.float32)

    packed = pack_pct_params(params)
    out = pct_encoder(f_e, packed)
    out = jax.block_until_ready(out)

    assert out.shape == (B, N, num_layers * embed_dim), out.shape
    assert bool(jnp.all(jnp.isfinite(out)))

    ref = _pct_encoder_ref(f_e, params)
    rel_err = float(jnp.max(jnp.abs(out - ref)) / (jnp.max(jnp.abs(ref)) + 1e-6))
    # bf16 MXU operands / pre-cast weights + one approx reciprocal -> ~few % max.
    assert rel_err < 0.05, rel_err

    print("KERNEL_OK")
</pallas_src>

<mosaic_0001>
module attributes {stable_mosaic.version = 11 : i64} {
  func.func @_pct_layer_kernel(%arg0: i32, %arg1: memref<2x8x32xf32, #tpu.memory_space<vmem>>, %arg2: memref<1x32x48xbf16, #tpu.memory_space<vmem>>, %arg3: memref<1x1x48xf32, #tpu.memory_space<vmem>>, %arg4: memref<1x32x32xbf16, #tpu.memory_space<vmem>>, %arg5: memref<1x1x32xf32, #tpu.memory_space<vmem>>, %arg6: memref<1x1x32xf32, #tpu.memory_space<vmem>>, %arg7: memref<1x1x32xf32, #tpu.memory_space<vmem>>, %arg8: memref<1x32x128xbf16, #tpu.memory_space<vmem>>, %arg9: memref<1x1x128xf32, #tpu.memory_space<vmem>>, %arg10: memref<2x8x128xf32, #tpu.memory_space<vmem>>, %arg11: memref<2x8x32xf32, #tpu.memory_space<vmem>>, %arg12: memref<2x8x32xbf16, #tpu.memory_space<vmem>>) attributes {dimension_semantics = [#tpu.dimension_semantics<arbitrary>], iteration_bounds = array<i64: 4>, scalar_prefetch = 0 : i64, scratch_operands = 2 : i64, tpu.core_type = #tpu.core_type<tc>, window_params = [{pipeline_mode = #tpu.pipeline_mode<synchronous>, transform_indices = @transform_0, window_bounds = array<i64: 2, 8, 32>}, {transform_indices = @transform_1, window_bounds = array<i64: 1, 32, 48>}, {transform_indices = @transform_2, window_bounds = array<i64: 1, 1, 48>}, {transform_indices = @transform_3, window_bounds = array<i64: 1, 32, 32>}, {transform_indices = @transform_4, window_bounds = array<i64: 1, 1, 32>}, {transform_indices = @transform_5, window_bounds = array<i64: 1, 1, 32>}, {transform_indices = @transform_6, window_bounds = array<i64: 1, 1, 32>}, {transform_indices = @transform_7, window_bounds = array<i64: 1, 32, 128>}, {pipeline_mode = #tpu.pipeline_mode<synchronous>, transform_indices = @transform_8, window_bounds = array<i64: 1, 1, 128>}, {pipeline_mode = #tpu.pipeline_mode<synchronous>, transform_indices = @transform_9, window_bounds = array<i64: 2, 8, 128>}]} {
    %c0_i32 = arith.constant 0 : i32
    %0 = arith.cmpi eq, %arg0, %c0_i32 : i32
    %1 = arith.extui %0 : i1 to i32
    %c0_i32_0 = arith.constant 0 : i32
    %2 = arith.cmpi ne, %1, %c0_i32_0 : i32
    scf.if %2 {
      %c0_52 = arith.constant 0 : index
      %c0_53 = arith.constant 0 : index
      %c0_54 = arith.constant 0 : index
      %88 = vector.load %arg1[%c0_52, %c0_53, %c0_54] : memref<2x8x32xf32, #tpu.memory_space<vmem>>, vector<2x8x32xf32>
      %c0_55 = arith.constant 0 : index
      %c0_56 = arith.constant 0 : index
      %c0_57 = arith.constant 0 : index
      %89 = vector.load %arg11[%c0_55, %c0_56, %c0_57] : memref<2x8x32xf32, #tpu.memory_space<vmem>>, vector<2x8x32xf32>
      tpu.vector_store %arg11[%c0_55, %c0_56, %c0_57], %88 {strides = array<i32>} : memref<2x8x32xf32, #tpu.memory_space<vmem>>, vector<2x8x32xf32>,
      %90 = arith.truncf %88 : vector<2x8x32xf32> to vector<2x8x32xbf16>
      %c0_58 = arith.constant 0 : index
      %c0_59 = arith.constant 0 : index
      %c0_60 = arith.constant 0 : index
      %91 = vector.load %arg12[%c0_58, %c0_59, %c0_60] : memref<2x8x32xbf16, #tpu.memory_space<vmem>>, vector<2x8x32xbf16>
      tpu.vector_store %arg12[%c0_58, %c0_59, %c0_60], %90 {strides = array<i32>} : memref<2x8x32xbf16, #tpu.memory_space<vmem>>, vector<2x8x32xbf16>,
      %c0_61 = arith.constant 0 : index
      %c0_62 = arith.constant 0 : index
      %c0_63 = arith.constant 0 : index
      %92 = vector.load %arg9[%c0_61, %c0_62, %c0_63] : memref<1x1x128xf32, #tpu.memory_space<vmem>>, vector<1x1x128xf32>
      %93 = vector.shape_cast %92 : vector<1x1x128xf32> to vector<1x1x128xf32>
      %94 = vector.broadcast %93 : vector<1x1x128xf32> to vector<2x8x128xf32>
      %c0_64 = arith.constant 0 : index
      %c0_65 = arith.constant 0 : index
      %c0_66 = arith.constant 0 : index
      %95 = vector.load %arg10[%c0_64, %c0_65, %c0_66] : memref<2x8x128xf32, #tpu.memory_space<vmem>>, vector<2x8x128xf32>
      tpu.vector_store %arg10[%c0_64, %c0_65, %c0_66], %94 {strides = array<i32>} : memref<2x8x128xf32, #tpu.memory_space<vmem>>, vector<2x8x128xf32>,
    } else {
    }
    %c0 = arith.constant 0 : index
    %c0_1 = arith.constant 0 : index
    %c0_2 = arith.constant 0 : index
    %3 = vector.load %arg11[%c0, %c0_1, %c0_2] : memref<2x8x32xf32, #tpu.memory_space<vmem>>, vector<2x8x32xf32>
    %c0_3 = arith.constant 0 : index
    %c0_4 = arith.constant 0 : index
    %c0_5 = arith.constant 0 : index
    %4 = vector.load %arg12[%c0_3, %c0_4, %c0_5] : memref<2x8x32xbf16, #tpu.memory_space<vmem>>, vector<2x8x32xbf16>
    %5 = vector.shape_cast %4 : vector<2x8x32xbf16> to vector<16x32xbf16>
    %c0_6 = arith.constant 0 : index
    %c0_7 = arith.constant 0 : index
    %c0_8 = arith.constant 0 : index
    %6 = vector.load %arg2[%c0_6, %c0_7, %c0_8] : memref<1x32x48xbf16, #tpu.memory_space<vmem>>, vector<1x32x48xbf16>
    %7 = vector.shape_cast %6 : vector<1x32x48xbf16> to vector<32x48xbf16>
    %cst = arith.constant dense<0.000000e+00> : vector<16x48xf32>
    %8 = tpu.matmul %5, %7, %cst {dimension_numbers = #tpu.dot_dimension_numbers<[1], [0], [0], [1], [0, 0, 1, 1], [], []>} : vector<16x32xbf16>, vector<32x48xbf16>, vector<16x48xf32> -> vector<16x48xf32>
    %c0_9 = arith.constant 0 : index
    %c0_10 = arith.constant 0 : index
    %c0_11 = arith.constant 0 : index
    %9 = vector.load %arg3[%c0_9, %c0_10, %c0_11] : memref<1x1x48xf32, #tpu.memory_space<vmem>>, vector<1x1x48xf32>
    %10 = vector.shape_cast %9 : vector<1x1x48xf32> to vector<1x48xf32>
    %11 = vector.broadcast %10 : vector<1x48xf32> to vector<16x48xf32>
    %12 = arith.addf %8, %11 : vector<16x48xf32>
    %13 = vector.shape_cast %12 : vector<16x48xf32> to vector<2x8x48xf32>
    %14 = vector.extract_strided_slice %13 {offsets = [0, 0, 0], sizes = [2, 8, 8], strides = [1, 1, 1]} : vector<2x8x48xf32> to vector<2x8x8xf32>
    %15 = vector.extract_strided_slice %13 {offsets = [0, 0, 8], sizes = [2, 8, 8], strides = [1, 1, 1]} : vector<2x8x48xf32> to vector<2x8x8xf32>
    %16 = vector.extract_strided_slice %13 {offsets = [0, 0, 16], sizes = [2, 8, 32], strides = [1, 1, 1]} : vector<2x8x48xf32> to vector<2x8x32xf32>
    %17 = arith.truncf %14 : vector<2x8x8xf32> to vector<2x8x8xbf16>
    %18 = arith.truncf %15 : vector<2x8x8xf32> to vector<2x8x8xbf16>
    "tpu.trace_start"() <{level = 10 : i32, message = "bnh,bmh->bnm"}> : () -> ()
    %cst_12 = arith.constant dense<0.000000e+00> : vector<2x8x8xf32>
    %19 = tpu.matmul %17, %18, %cst_12 {dimension_numbers = #tpu.dot_dimension_numbers<[2], [2], [1], [1], [0, 0, 0, 1, 1, 1], [0], [0]>} : vector<2x8x8xbf16>, vector<2x8x8xbf16>, vector<2x8x8xf32> -> vector<2x8x8xf32>
    "tpu.trace_stop"() : () -> ()
    %cst_13 = arith.constant dense<0xFF800000> : vector<2x8xf32>
    %20 = vector.multi_reduction <maximumf>, %19, %cst_13 [1] : vector<2x8x8xf32> to vector<2x8xf32>
    %21 = vector.shape_cast %20 : vector<2x8xf32> to vector<2x1x8xf32>
    %22 = vector.broadcast %21 : vector<2x1x8xf32> to vector<2x8x8xf32>
    %23 = arith.subf %19, %22 : vector<2x8x8xf32>
    %24 = math.exp %23 : vector<2x8x8xf32>
    %cst_14 = arith.constant dense<0.000000e+00> : vector<2x8xf32>
    %25 = vector.multi_reduction <add>, %24, %cst_14 [1] : vector<2x8x8xf32> to vector<2x8xf32>
    %26 = vector.shape_cast %25 : vector<2x8xf32> to vector<2x1x8xf32>
    %27 = vector.broadcast %26 : vector<2x1x8xf32> to vector<2x8x8xf32>
    %28 = arith.divf %24, %27 : vector<2x8x8xf32>
    %cst_15 = arith.constant dense<0.000000e+00> : vector<2x8xf32>
    %29 = vector.multi_reduction <add>, %28, %cst_15 [2] : vector<2x8x8xf32> to vector<2x8xf32>
    %30 = vector.shape_cast %29 : vector<2x8xf32> to vector<2x8x1xf32>
    %31 = tpu.reciprocal %30 {approx = true} : vector<2x8x1xf32> -> vector<2x8x1xf32>
    %32 = vector.broadcast %31 : vector<2x8x1xf32> to vector<2x8x8xf32>
    %33 = arith.mulf %28, %32 : vector<2x8x8xf32>
    %34 = arith.truncf %33 : vector<2x8x8xf32> to vector<2x8x8xbf16>
    %35 = arith.truncf %16 : vector<2x8x32xf32> to vector<2x8x32xbf16>
    "tpu.trace_start"() <{level = 10 : i32, message = "bnm,bmd->bnd"}> : () -> ()
    %cst_16 = arith.constant dense<0.000000e+00> : vector<2x8x32xf32>
    %36 = tpu.matmul %34, %35, %cst_16 {dimension_numbers = #tpu.dot_dimension_numbers<[2], [1], [1], [2], [0, 0, 0, 1, 1, 2], [0], [0]>} : vector<2x8x8xbf16>, vector<2x8x32xbf16>, vector<2x8x32xf32> -> vector<2x8x32xf32>
    "tpu.trace_stop"() : () -> ()
    %37 = arith.subf %3, %36 : vector<2x8x32xf32>
    %38 = vector.shape_cast %37 : vector<2x8x32xf32> to vector<16x32xf32>
    %39 = arith.truncf %38 : vector<16x32xf32> to vector<16x32xbf16>
    %c0_17 = arith.constant 0 : index
    %c0_18 = arith.constant 0 : index
    %c0_19 = arith.constant 0 : index
    %40 = vector.load %arg4[%c0_17, %c0_18, %c0_19] : memref<1x32x32xbf16, #tpu.memory_space<vmem>>, vector<1x32x32xbf16>
    %41 = vector.shape_cast %40 : vector<1x32x32xbf16> to vector<32x32xbf16>
    %cst_20 = arith.constant dense<0.000000e+00> : vector<16x32xf32>
    %42 = tpu.matmul %39, %41, %cst_20 {dimension_numbers = #tpu.dot_dimension_numbers<[1], [0], [0], [1], [0, 0, 1, 1], [], []>} : vector<16x32xbf16>, vector<32x32xbf16>, vector<16x32xf32> -> vector<16x32xf32>
    %c0_21 = arith.constant 0 : index
    %c0_22 = arith.constant 0 : index
    %c0_23 = arith.constant 0 : index
    %43 = vector.load %arg5[%c0_21, %c0_22, %c0_23] : memref<1x1x32xf32, #tpu.memory_space<vmem>>, vector<1x1x32xf32>
    %44 = vector.shape_cast %43 : vector<1x1x32xf32> to vector<1x32xf32>
    %45 = vector.broadcast %44 : vector<1x32xf32> to vector<16x32xf32>
    %46 = arith.addf %42, %45 : vector<16x32xf32>
    %cst_24 = arith.constant dense<0.000000e+00> : vector<32xf32>
    %47 = vector.multi_reduction <add>, %46, %cst_24 [0] : vector<16x32xf32> to vector<32xf32>
    %48 = vector.shape_cast %47 : vector<32xf32> to vector<1x32xf32>
    %cst_25 = arith.constant 1.600000e+01 : f32
    %49 = vector.broadcast %cst_25 : f32 to vector<1x32xf32>
    %50 = arith.divf %48, %49 : vector<1x32xf32>
    %51 = vector.broadcast %50 : vector<1x32xf32> to vector<16x32xf32>
    %52 = arith.subf %46, %51 : vector<16x32xf32>
    %53 = arith.mulf %52, %52 : vector<16x32xf32>
    %cst_26 = arith.constant dense<0.000000e+00> : vector<32xf32>
    %54 = vector.multi_reduction <add>, %53, %cst_26 [0] : vector<16x32xf32> to vector<32xf32>
    %55 = vector.shape_cast %54 : vector<32xf32> to vector<1x32xf32>
    %cst_27 = arith.constant 1.600000e+01 : f32
    %56 = vector.broadcast %cst_27 : f32 to vector<1x32xf32>
    %57 = arith.divf %55, %56 : vector<1x32xf32>
    %58 = vector.broadcast %50 : vector<1x32xf32> to vector<16x32xf32>
    %59 = arith.subf %46, %58 : vector<16x32xf32>
    %cst_28 = arith.constant 9.99999974E-6 : f32
    %60 = vector.broadcast %cst_28 : f32 to vector<1x32xf32>
    %61 = arith.addf %57, %60 : vector<1x32xf32>
    %62 = math.rsqrt %61 : vector<1x32xf32>
    %63 = vector.broadcast %62 : vector<1x32xf32> to vector<16x32xf32>
    %64 = arith.mulf %59, %63 : vector<16x32xf32>
    %c0_29 = arith.constant 0 : index
    %c0_30 = arith.constant 0 : index
    %c0_31 = arith.constant 0 : index
    %65 = vector.load %arg6[%c0_29, %c0_30, %c0_31] : memref<1x1x32xf32, #tpu.memory_space<vmem>>, vector<1x1x32xf32>
    %66 = vector.shape_cast %65 : vector<1x1x32xf32> to vector<1x32xf32>
    %67 = vector.broadcast %66 : vector<1x32xf32> to vector<16x32xf32>
    %68 = arith.mulf %64, %67 : vector<16x32xf32>
    %c0_32 = arith.constant 0 : index
    %c0_33 = arith.constant 0 : index
    %c0_34 = arith.constant 0 : index
    %69 = vector.load %arg7[%c0_32, %c0_33, %c0_34] : memref<1x1x32xf32, #tpu.memory_space<vmem>>, vector<1x1x32xf32>
    %70 = vector.shape_cast %69 : vector<1x1x32xf32> to vector<1x32xf32>
    %71 = vector.broadcast %70 : vector<1x32xf32> to vector<16x32xf32>
    %72 = arith.addf %68, %71 : vector<16x32xf32>
    %cst_35 = arith.constant 0.000000e+00 : f32
    %73 = vector.broadcast %cst_35 : f32 to vector<16x32xf32>
    %74 = arith.maximumf %72, %73 : vector<16x32xf32>
    %75 = vector.shape_cast %74 : vector<16x32xf32> to vector<2x8x32xf32>
    %76 = arith.addf %75, %36 : vector<2x8x32xf32>
    %77 = arith.truncf %76 : vector<2x8x32xf32> to vector<2x8x32xbf16>
    %c0_36 = arith.constant 0 : index
    %c0_37 = arith.constant 0 : index
    %c0_38 = arith.constant 0 : index
    %78 = vector.load %arg11[%c0_36, %c0_37, %c0_38] : memref<2x8x32xf32, #tpu.memory_space<vmem>>, vector<2x8x32xf32>
    tpu.vector_store %arg11[%c0_36, %c0_37, %c0_38], %76 {strides = array<i32>} : memref<2x8x32xf32, #tpu.memory_space<vmem>>, vector<2x8x32xf32>,
    %c0_39 = arith.constant 0 : index
    %c0_40 = arith.constant 0 : index
    %c0_41 = arith.constant 0 : index
    %79 = vector.load %arg12[%c0_39, %c0_40, %c0_41] : memref<2x8x32xbf16, #tpu.memory_space<vmem>>, vector<2x8x32xbf16>
    tpu.vector_store %arg12[%c0_39, %c0_40, %c0_41], %77 {strides = array<i32>} : memref<2x8x32xbf16, #tpu.memory_space<vmem>>, vector<2x8x32xbf16>,
    %80 = vector.shape_cast %77 : vector<2x8x32xbf16> to vector<16x32xbf16>
    %c0_42 = arith.constant 0 : index
    %c0_43 = arith.constant 0 : index
    %c0_44 = arith.constant 0 : index
    %81 = vector.load %arg8[%c0_42, %c0_43, %c0_44] : memref<1x32x128xbf16, #tpu.memory_space<vmem>>, vector<1x32x128xbf16>
    %82 = vector.shape_cast %81 : vector<1x32x128xbf16> to vector<32x128xbf16>
    %cst_45 = arith.constant dense<0.000000e+00> : vector<16x128xf32>
    %83 = tpu.matmul %80, %82, %cst_45 {dimension_numbers = #tpu.dot_dimension_numbers<[1], [0], [0], [1], [0, 0, 1, 1], [], []>} : vector<16x32xbf16>, vector<32x128xbf16>, vector<16x128xf32> -> vector<16x128xf32>
    %c0_46 = arith.constant 0 : index
    %c0_47 = arith.constant 0 : index
    %c0_48 = arith.constant 0 : index
    %84 = vector.load %arg10[%c0_46, %c0_47, %c0_48] : memref<2x8x128xf32, #tpu.memory_space<vmem>>, vector<2x8x128xf32>
    %85 = vector.shape_cast %83 : vector<16x128xf32> to vector<2x8x128xf32>
    %86 = arith.addf %84, %85 : vector<2x8x128xf32>
    %c0_49 = arith.constant 0 : index
    %c0_50 = arith.constant 0 : index
    %c0_51 = arith.constant 0 : index
    %87 = vector.load %arg10[%c0_49, %c0_50, %c0_51] : memref<2x8x128xf32, #tpu.memory_space<vmem>>, vector<2x8x128xf32>
    tpu.vector_store %arg10[%c0_49, %c0_50, %c0_51], %86 {strides = array<i32>} : memref<2x8x128xf32, #tpu.memory_space<vmem>>, vector<2x8x128xf32>,
    return
  }
  func.func @transform_0(%arg0: i32) -> (i32, i32, i32) {
    %c0_i32 = arith.constant 0 : i32
    %c0_i32_0 = arith.constant 0 : i32
    %c0_i32_1 = arith.constant 0 : i32
    %c0_i32_2 = arith.constant 0 : i32
    return %c0_i32, %c0_i32_0, %c0_i32_1 : i32, i32, i32
  }
  func.func @transform_1(%arg0: i32) -> (i32, i32, i32) {
    %c0_i32 = arith.constant 0 : i32
    %c0_i32_0 = arith.constant 0 : i32
    %c0_i32_1 = arith.constant 0 : i32
    return %arg0, %c0_i32, %c0_i32_0 : i32, i32, i32
  }
  func.func @transform_2(%arg0: i32) -> (i32, i32, i32) {
    %c0_i32 = arith.constant 0 : i32
    %c0_i32_0 = arith.constant 0 : i32
    %c0_i32_1 = arith.constant 0 : i32
    return %arg0, %c0_i32, %c0_i32_0 : i32, i32, i32
  }
  func.func @transform_3(%arg0: i32) -> (i32, i32, i32) {
    %c0_i32 = arith.constant 0 : i32
    %c0_i32_0 = arith.constant 0 : i32
    %c0_i32_1 = arith.constant 0 : i32
    return %arg0, %c0_i32, %c0_i32_0 : i32, i32, i32
  }
  func.func @transform_4(%arg0: i32) -> (i32, i32, i32) {
    %c0_i32 = arith.constant 0 : i32
    %c0_i32_0 = arith.constant 0 : i32
    %c0_i32_1 = arith.constant 0 : i32
    return %arg0, %c0_i32, %c0_i32_0 : i32, i32, i32
  }
  func.func @transform_5(%arg0: i32) -> (i32, i32, i32) {
    %c0_i32 = arith.constant 0 : i32
    %c0_i32_0 = arith.constant 0 : i32
    %c0_i32_1 = arith.constant 0 : i32
    return %arg0, %c0_i32, %c0_i32_0 : i32, i32, i32
  }
  func.func @transform_6(%arg0: i32) -> (i32, i32, i32) {
    %c0_i32 = arith.constant 0 : i32
    %c0_i32_0 = arith.constant 0 : i32
    %c0_i32_1 = arith.constant 0 : i32
    return %arg0, %c0_i32, %c0_i32_0 : i32, i32, i32
  }
  func.func @transform_7(%arg0: i32) -> (i32, i32, i32) {
    %c0_i32 = arith.constant 0 : i32
    %c0_i32_0 = arith.constant 0 : i32
    %c0_i32_1 = arith.constant 0 : i32
    return %arg0, %c0_i32, %c0_i32_0 : i32, i32, i32
  }
  func.func @transform_8(%arg0: i32) -> (i32, i32, i32) {
    %c0_i32 = arith.constant 0 : i32
    %c0_i32_0 = arith.constant 0 : i32
    %c0_i32_1 = arith.constant 0 : i32
    %c0_i32_2 = arith.constant 0 : i32
    return %c0_i32, %c0_i32_0, %c0_i32_1 : i32, i32, i32
  }
  func.func @transform_9(%arg0: i32) -> (i32, i32, i32) {
    %c0_i32 = arith.constant 0 : i32
    %c0_i32_0 = arith.constant 0 : i32
    %c0_i32_1 = arith.constant 0 : i32
    %c0_i32_2 = arith.constant 0 : i32
    return %c0_i32, %c0_i32_0, %c0_i32_1 : i32, i32, i32
  }
}

</mosaic_0001>

<llo_original>
// kernel: tpu_custom_call.1
$region0: #{tpu_custom_call.1}
  #allocation0 [shape = 'u32[]', space=smem, size = 0x4, offset = 0x4, fixed_abs, tag = 'smem constant byte address 0x4 - core index']
  #allocation1 [shape = 'u32[72,128]{1,0:T(1,128)}', space=vmem, size = 0x9000, scoped, tag = 'internal scratch']
  #allocation2 [shape = 'f32[2,8,32]{2,1,0:T(8,128)}', space=vmem, size = 0x2000, scoped, tag = 'scratch operand']
  #allocation3 [shape = 'bf16[2,8,32]{2,1,0:T(8,128)(2,1)}', space=vmem, size = 0x1000, scoped, tag = 'scratch operand']
  %s0 = inlined_call_operand.hbm [shape: f32[2,8,32], index: 0, kind: input, shape index: {}]
  %s1 = inlined_call_operand.hbm [shape: bf16[4,32,48], index: 1, kind: input, shape index: {}]
  %s2 = inlined_call_operand.hbm [shape: f32[4,1,48], index: 2, kind: input, shape index: {}]
  %s3 = inlined_call_operand.hbm [shape: bf16[4,32,32], index: 3, kind: input, shape index: {}]
  %s4 = inlined_call_operand.hbm [shape: f32[4,1,32], index: 4, kind: input, shape index: {}]
  %s5 = inlined_call_operand.vmem [shape: f32[4,1,32], index: 5, kind: input, shape index: {}]
  %s6 = inlined_call_operand.hbm [shape: f32[4,1,32], index: 6, kind: input, shape index: {}]
  %s7 = inlined_call_operand.hbm [shape: bf16[4,32,128], index: 7, kind: input, shape index: {}]
  %s8 = inlined_call_operand.vmem [shape: f32[1,1,128], index: 8, kind: input, shape index: {}]
  %s9 = inlined_call_operand.hbm [shape: f32[2,8,128], index: 9, kind: output, shape index: {}]
  %s10 = sld [smem:[#allocation0]]
  $region101: #{tpu_custom_call.1} parent=0
    _
  %s12 = ssub.s32 1, %s10
  %s13 = scalar_select 0, %s12, %s10
  $region1: #{tpu_custom_call.1} parent=0
    #allocation4 [shape = 'u8[8192]{0}', space=vmem, size = 0x2000, scoped, tag = 'input window, operand 0, single buffered']
    #allocation5 [shape = 's32[2]{0}', space=sflag, size = 0x8, scoped, tag = 'scoped memory for tpu_custom_call.1']
    #allocation6 [shape = 's32[2]{0}', space=sflag, size = 0x8, scoped, tag = 'scoped memory for tpu_custom_call.1']
    #allocation7 [shape = 'u8[16384]{0}', space=vmem, size = 0x4000, scoped, tag = 'input window, operand 1']
    #allocation8 [shape = 's32[2]{0}', space=sflag, size = 0x8, scoped, tag = 'scoped memory for tpu_custom_call.1']
    #allocation9 [shape = 'u8[1024]{0}', space=vmem, size = 0x400, scoped, tag = 'input window, operand 2']
    #allocation10 [shape = 'u8[16384]{0}', space=vmem, size = 0x4000, scoped, tag = 'input window, operand 3']
    #allocation11 [shape = 's32[2]{0}', space=sflag, size = 0x8, scoped, tag = 'scoped memory for tpu_custom_call.1']
    #allocation12 [shape = 'u8[1024]{0}', space=vmem, size = 0x400, scoped, tag = 'input window, operand 4']
    #allocation13 [shape = 'u8[1024]{0}', space=vmem, size = 0x400, scoped, tag = 'input window, operand 6']
    #allocation14 [shape = 's32[2]{0}', space=sflag, size = 0x8, scoped, tag = 'scoped memory for tpu_custom_call.1']
    #allocation15 [shape = 'u8[16384]{0}', space=vmem, size = 0x4000, scoped, tag = 'input window, operand 7']
    #allocation16 [shape = 'u8[8192]{0}', space=vmem, size = 0x2000, scoped, tag = 'output window, operand 0, single buffered']
    %14 = vsyncpa [#allocation5], 0
    %15 = vsyncpa [#allocation8], 0
    %s16 = scalar_lea.sflag [#allocation8], 1
    %17 = vsyncpa %s16, 0
    %18 = vsyncpa [#allocation11], 0
    %s19 = scalar_lea.sflag [#allocation11], 1
    %20 = vsyncpa %s19, 0
    %21 = vsyncpa [#allocation14], 0
    %s22 = scalar_lea.sflag [#allocation14], 1
    %23 = vsyncpa %s22, 0
    %24 = vsyncpa [#allocation6], 0
    loop: start=0, step=1, limit=6
    $region2: #{tpu_custom_call.1} parent=1 // loop_pre_header
      _
    $region3: #{tpu_custom_call.1} parent=1 // loop_header
      %s26 = sphi 0, %s30
      %p27 = scmp.ge.s32.totalorder %s26, 6
      %s34 = sphi 0, %s34
      %s36 = sphi 0, %s34
      %s37 = sphi 0, %s36
      %s51 = sphi 0, %s37
      %s57 = sphi 0, %s59
      %s60 = sphi 0, %s57
      %s61 = sphi 0, %s60
      %s77 = sphi 0, %s61
      %s83 = sphi 0, %s85
      %s86 = sphi 0, %s83
      %s87 = sphi 0, %s86
      %s103 = sphi 0, %s87
      %s109 = sphi 0, %s111
      %s112 = sphi 0, %s109
      %s113 = sphi 0, %s112
      %s129 = sphi 0, %s113
      %s135 = sphi 0, %s137
      %s138 = sphi 0, %s135
      %s139 = sphi 0, %s138
      %s155 = sphi 0, %s139
      %s161 = sphi 0, %s163
      %s164 = sphi 0, %s161
      %s165 = sphi 0, %s164
      %s181 = sphi 0, %s165
      %s187 = sphi 0, %s189
      %s190 = sphi 0, %s187
      %s191 = sphi 0, %s190
      %s207 = sphi 0, %s191
      %s213 = sphi 0, %s215
      %s216 = sphi 0, %s213
      %s217 = sphi 0, %s216
      %s233 = sphi 0, %s217
      %s237 = sphi 0, %s237
      %s239 = sphi 0, %s237
      %s240 = sphi 0, %s239
      %s254 = sphi 0, %s240
      %s258 = sphi 0, %s258
      %s260 = sphi 0, %s258
      %s261 = sphi 0, %s260
      %s275 = sphi 0, %s261
    $region4: #{tpu_custom_call.1} parent=1 // loop_header_branch
      %29 = sbr.rel (%p27) target = $region8
    $region5: #{tpu_custom_call.1} parent=1 // loop_body
      %s31 = ssub.s32 %s26, 1
      %s32 = ssub.s32 %s26, 2
      %s33 = sadd.s32 %s26, 1
      %s35 = sadd.s32 %s34, 1
      %p38 = scmp.eq.s32.totalorder %s26, 3
      %p39 = scmp.ne.s32.totalorder %s34, %s36
      %p40 = scmp.eq.s32.totalorder %s26, 0
      %p41 = por %p39, %p40
      %p42 = scmp.ne.s32.totalorder %s34, %s36
      %p43 = scmp.eq.s32.totalorder %s31, 3
      %p44 = por %p42, %p43
      %p45 = scmp.ne.s32.totalorder %s36, %s37
      %p46 = scmp.eq.s32.totalorder %s31, 0
      %p47 = por %p45, %p46
      %p48 = scmp.ne.s32.totalorder %s36, %s37
      %p49 = scmp.eq.s32.totalorder %s32, 3
      %p50 = por %p48, %p49
      %p52 = scmp.ne.s32.totalorder %s37, %s51
      %p53 = scmp.eq.s32.totalorder %s32, 0
      %p54 = por %p52, %p53
      %s55 = ssub.s32 %s26, %s33
      %p56 = scmp.eq.s32.totalorder %s55, 0
      %s58 = sadd.s32 %s57, 1
      %s59 = scalar_select %p56, %s57, %s58
      %p62 = pneg %p56
      %p63 = scmp.eq.s32.totalorder %s26, 3
      %p64 = por %p62, %p63
      %p65 = scmp.ne.s32.totalorder %s57, %s60
      %p66 = scmp.eq.s32.totalorder %s26, 0
      %p67 = por %p65, %p66
      %p68 = scmp.ne.s32.totalorder %s57, %s60
      %p69 = scmp.eq.s32.totalorder %s31, 3
      %p70 = por %p68, %p69
      %p71 = scmp.ne.s32.totalorder %s60, %s61
      %p72 = scmp.eq.s32.totalorder %s31, 0
      %p73 = por %p71, %p72
      %p74 = scmp.ne.s32.totalorder %s60, %s61
      %p75 = scmp.eq.s32.totalorder %s32, 3
      %p76 = por %p74, %p75
      %p78 = scmp.ne.s32.totalorder %s61, %s77
      %p79 = scmp.eq.s32.totalorder %s32, 0
      %p80 = por %p78, %p79
      %s81 = ssub.s32 %s26, %s33
      %p82 = scmp.eq.s32.totalorder %s81, 0
      %s84 = sadd.s32 %s83, 1
      %s85 = scalar_select %p82, %s83, %s84
      %p88 = pneg %p82
      %p89 = scmp.eq.s32.totalorder %s26, 3
      %p90 = por %p88, %p89
      %p91 = scmp.ne.s32.totalorder %s83, %s86
      %p92 = scmp.eq.s32.totalorder %s26, 0
      %p93 = por %p91, %p92
      %p94 = scmp.ne.s32.totalorder %s83, %s86
      %p95 = scmp.eq.s32.totalorder %s31, 3
      %p96 = por %p94, %p95
      %p97 = scmp.ne.s32.totalorder %s86, %s87
      %p98 = scmp.eq.s32.totalorder %s31, 0
      %p99 = por %p97, %p98
      %p100 = scmp.ne.s32.totalorder %s86, %s87
      %p101 = scmp.eq.s32.totalorder %s32, 3
      %p102 = por %p100, %p101
      %p104 = scmp.ne.s32.totalorder %s87, %s103
      %p105 = scmp.eq.s32.totalorder %s32, 0
      %p106 = por %p104, %p105
      %s107 = ssub.s32 %s26, %s33
      %p108 = scmp.eq.s32.totalorder %s107, 0
      %s110 = sadd.s32 %s109, 1
      %s111 = scalar_select %p108, %s109, %s110
      %p114 = pneg %p108
      %p115 = scmp.eq.s32.totalorder %s26, 3
      %p116 = por %p114, %p115
      %p117 = scmp.ne.s32.totalorder %s109, %s112
      %p118 = scmp.eq.s32.totalorder %s26, 0
      %p119 = por %p117, %p118
      %p120 = scmp.ne.s32.totalorder %s109, %s112
      %p121 = scmp.eq.s32.totalorder %s31, 3
      %p122 = por %p120, %p121
      %p123 = scmp.ne.s32.totalorder %s112, %s113
      %p124 = scmp.eq.s32.totalorder %s31, 0
      %p125 = por %p123, %p124
      %p126 = scmp.ne.s32.totalorder %s112, %s113
      %p127 = scmp.eq.s32.totalorder %s32, 3
      %p128 = por %p126, %p127
      %p130 = scmp.ne.s32.totalorder %s113, %s129
      %p131 = scmp.eq.s32.totalorder %s32, 0
      %p132 = por %p130, %p131
      %s133 = ssub.s32 %s26, %s33
      %p134 = scmp.eq.s32.totalorder %s133, 0
      %s136 = sadd.s32 %s135, 1
      %s137 = scalar_select %p134, %s135, %s136
      %p140 = pneg %p134
      %p141 = scmp.eq.s32.totalorder %s26, 3
      %p142 = por %p140, %p141
      %p143 = scmp.ne.s32.totalorder %s135, %s138
      %p144 = scmp.eq.s32.totalorder %s26, 0
      %p145 = por %p143, %p144
      %p146 = scmp.ne.s32.totalorder %s135, %s138
      %p147 = scmp.eq.s32.totalorder %s31, 3
      %p148 = por %p146, %p147
      %p149 = scmp.ne.s32.totalorder %s138, %s139
      %p150 = scmp.eq.s32.totalorder %s31, 0
      %p151 = por %p149, %p150
      %p152 = scmp.ne.s32.totalorder %s138, %s139
      %p153 = scmp.eq.s32.totalorder %s32, 3
      %p154 = por %p152, %p153
      %p156 = scmp.ne.s32.totalorder %s139, %s155
      %p157 = scmp.eq.s32.totalorder %s32, 0
      %p158 = por %p156, %p157
      %s159 = ssub.s32 %s26, %s33
      %p160 = scmp.eq.s32.totalorder %s159, 0
      %s162 = sadd.s32 %s161, 1
      %s163 = scalar_select %p160, %s161, %s162
      %p166 = pneg %p160
      %p167 = scmp.eq.s32.totalorder %s26, 3
      %p168 = por %p166, %p167
      %p169 = scmp.ne.s32.totalorder %s161, %s164
      %p170 = scmp.eq.s32.totalorder %s26, 0
      %p171 = por %p169, %p170
      %p172 = scmp.ne.s32.totalorder %s161, %s164
      %p173 = scmp.eq.s32.totalorder %s31, 3
      %p174 = por %p172, %p173
      %p175 = scmp.ne.s32.totalorder %s164, %s165
      %p176 = scmp.eq.s32.totalorder %s31, 0
      %p177 = por %p175, %p176
      %p178 = scmp.ne.s32.totalorder %s164, %s165
      %p179 = scmp.eq.s32.totalorder %s32, 3
      %p180 = por %p178, %p179
      %p182 = scmp.ne.s32.totalorder %s165, %s181
      %p183 = scmp.eq.s32.totalorder %s32, 0
      %p184 = por %p182, %p183
      %s185 = ssub.s32 %s26, %s33
      %p186 = scmp.eq.s32.totalorder %s185, 0
      %s188 = sadd.s32 %s187, 1
      %s189 = scalar_select %p186, %s187, %s188
      %p192 = pneg %p186
      %p193 = scmp.eq.s32.totalorder %s26, 3
      %p194 = por %p192, %p193
      %p195 = scmp.ne.s32.totalorder %s187, %s190
      %p196 = scmp.eq.s32.totalorder %s26, 0
      %p197 = por %p195, %p196
      %p198 = scmp.ne.s32.totalorder %s187, %s190
      %p199 = scmp.eq.s32.totalorder %s31, 3
      %p200 = por %p198, %p199
      %p201 = scmp.ne.s32.totalorder %s190, %s191
      %p202 = scmp.eq.s32.totalorder %s31, 0
      %p203 = por %p201, %p202
      %p204 = scmp.ne.s32.totalorder %s190, %s191
      %p205 = scmp.eq.s32.totalorder %s32, 3
      %p206 = por %p204, %p205
      %p208 = scmp.ne.s32.totalorder %s191, %s207
      %p209 = scmp.eq.s32.totalorder %s32, 0
      %p210 = por %p208, %p209
      %s211 = ssub.s32 %s26, %s33
      %p212 = scmp.eq.s32.totalorder %s211, 0
      %s214 = sadd.s32 %s213, 1
      %s215 = scalar_select %p212, %s213, %s214
      %p218 = pneg %p212
      %p219 = scmp.eq.s32.totalorder %s26, 3
      %p220 = por %p218, %p219
      %p221 = scmp.ne.s32.totalorder %s213, %s216
      %p222 = scmp.eq.s32.totalorder %s26, 0
      %p223 = por %p221, %p222
      %p224 = scmp.ne.s32.totalorder %s213, %s216
      %p225 = scmp.eq.s32.totalorder %s31, 3
      %p226 = por %p224, %p225
      %p227 = scmp.ne.s32.totalorder %s216, %s217
      %p228 = scmp.eq.s32.totalorder %s31, 0
      %p229 = por %p227, %p228
      %p230 = scmp.ne.s32.totalorder %s216, %s217
      %p231 = scmp.eq.s32.totalorder %s32, 3
      %p232 = por %p230, %p231
      %p234 = scmp.ne.s32.totalorder %s217, %s233
      %p235 = scmp.eq.s32.totalorder %s32, 0
      %p236 = por %p234, %p235
      %s238 = sadd.s32 %s237, 1
      %p241 = scmp.eq.s32.totalorder %s26, 3
      %p242 = scmp.ne.s32.totalorder %s237, %s239
      %p243 = scmp.eq.s32.totalorder %s26, 0
      %p244 = por %p242, %p243
      %p245 = scmp.ne.s32.totalorder %s237, %s239
      %p246 = scmp.eq.s32.totalorder %s31, 3
      %p247 = por %p245, %p246
      %p248 = scmp.ne.s32.totalorder %s239, %s240
      %p249 = scmp.eq.s32.totalorder %s31, 0
      %p250 = por %p248, %p249
      %p251 = scmp.ne.s32.totalorder %s239, %s240
      %p252 = scmp.eq.s32.totalorder %s32, 3
      %p253 = por %p251, %p252
      %p255 = scmp.ne.s32.totalorder %s240, %s254
      %p256 = scmp.eq.s32.totalorder %s32, 0
      %p257 = por %p255, %p256
      %s259 = sadd.s32 %s258, 1
      %p262 = scmp.eq.s32.totalorder %s26, 3
      %p263 = scmp.ne.s32.totalorder %s258, %s260
      %p264 = scmp.eq.s32.totalorder %s26, 0
      %p265 = por %p263, %p264
      %p266 = scmp.ne.s32.totalorder %s258, %s260
      %p267 = scmp.eq.s32.totalorder %s31, 3
      %p268 = por %p266, %p267
      %p269 = scmp.ne.s32.totalorder %s260, %s261
      %p270 = scmp.eq.s32.totalorder %s31, 0
      %p271 = por %p269, %p270
      %p272 = scmp.ne.s32.totalorder %s260, %s261
      %p273 = scmp.eq.s32.totalorder %s32, 3
      %p274 = por %p272, %p273
      %p276 = scmp.ne.s32.totalorder %s261, %s275
      %p277 = scmp.eq.s32.totalorder %s32, 0
      %p278 = por %p276, %p277
      %p279 = scmp.le.s32.totalorder 1, %s26
      %p280 = scmp.lt.s32.totalorder %s26, 5
      %p281 = pnand %p279, %p280
      %p282 = pneg %p281
      // Predicated region
      $region9: #{tpu_custom_call.1} parent=5 // pred_check
        _
      $region10: #{tpu_custom_call.1} parent=5 // pred_check_branch
        %284 = sbr.rel (%p281) target = $region12
      $region11: #{tpu_custom_call.1} parent=5 // pred_region
        %s285 = ssub.s32 %s26, 1
        // Predicated region
        $region13: #{tpu_custom_call.1} parent=11 // pred_check
          %p286 = pneg %p47
        $region14: #{tpu_custom_call.1} parent=11 // pred_check_branch
          %288 = sbr.rel (%p286) target = $region16
        $region15: #{tpu_custom_call.1} parent=11 // pred_region
          %290 = vsyncadd [#allocation5], 0
          %s291 = sshll.u32 %s0, 4
          %s292 = int_to_ptr.hbm [resolvable:$true] %s291
          %s293 = sshll.u32 [#allocation4], 4
          %s294 = int_to_ptr.vmem [resolvable:$true] %s293
          %299 = dma.hbm_to_vmem [thread:$0]  %s292, 256, %s294, [#allocation5], 128, 128, 8
        $region16: #{tpu_custom_call.1} parent=11 // pred_fallthru
          _
        // Predicated region
        $region17: #{tpu_custom_call.1} parent=11 // pred_check
          %p300 = pneg %p250
        $region18: #{tpu_custom_call.1} parent=11 // pred_check_branch
          %302 = sbr.rel (%p300) target = $region20
        $region19: #{tpu_custom_call.1} parent=11 // pred_region
          _
        $region20: #{tpu_custom_call.1} parent=11 // pred_fallthru
          _
      $region12: #{tpu_custom_call.1} parent=5 // pred_fallthru
        _
      %p303 = scmp.lt.s32.totalorder %s26, 4
      // Predicated region
      $region21: #{tpu_custom_call.1} parent=5 // pred_check
        %p304 = pneg %p303
      $region22: #{tpu_custom_call.1} parent=5 // pred_check_branch
        %306 = sbr.rel (%p304) target = $region24
      $region23: #{tpu_custom_call.1} parent=5 // pred_region
        // Predicated region
        $region25: #{tpu_custom_call.1} parent=23 // pred_check
          %p307 = pneg %p67
        $region26: #{tpu_custom_call.1} parent=23 // pred_check_branch
          %309 = sbr.rel (%p307) target = $region28
        $region27: #{tpu_custom_call.1} parent=23 // pred_region
          %s310 = sand.u32 %s26, 1
          %s311 = scalar_lea.sflag [#allocation8], %s310
          %s312 = sand.u32 %s57, 1
          %s313 = smul.addr %s312, 16
          %s314 = scalar_lea.vmem [#allocation7], %s313
          %316 = vsyncadd %s311, 0
          %s317 = smul.addr %s26, 4
          %s318 = smul.addr %s317, 4
          %s319 = scalar_lea.hbm %s1, %s318
          %s320 = sshll.u32 %s319, 4
          %s321 = int_to_ptr.hbm [resolvable:$true] %s320
          %s322 = sshll.u32 %s314, 4
          %s323 = int_to_ptr.vmem [resolvable:$true] %s322
          %328 = dma.hbm_to_vmem [thread:$0]  %s321, 256, %s323, %s311, 64, 64, 4
        $region28: #{tpu_custom_call.1} parent=23 // pred_fallthru
          _
        // Predicated region
        $region29: #{tpu_custom_call.1} parent=23 // pred_check
          %p329 = pneg %p93
        $region30: #{tpu_custom_call.1} parent=23 // pred_check_branch
          %331 = sbr.rel (%p329) target = $region32
        $region31: #{tpu_custom_call.1} parent=23 // pred_region
          %s332 = sand.u32 %s26, 1
          %s333 = scalar_lea.sflag [#allocation8], %s332
          %s334 = sand.u32 %s83, 1
          %s335 = scalar_lea.vmem [#allocation9], %s334
          %337 = vsyncadd %s333, 0
          %s338 = scalar_lea.hbm %s2, %s26
          %s340 = sshll.u32 %s338, 4
          %s341 = int_to_ptr.hbm [resolvable:$true] %s340
          %s342 = sshll.u32 %s335, 4
          %s343 = int_to_ptr.vmem [resolvable:$true] %s342
          %345 = dma.hbm_to_vmem [thread:$0]  %s341, 16, %s343, %s333
        $region32: #{tpu_custom_call.1} parent=23 // pred_fallthru
          _
        // Predicated region
        $region33: #{tpu_custom_call.1} parent=23 // pred_check
          %p346 = pneg %p119
        $region34: #{tpu_custom_call.1} parent=23 // pred_check_branch
          %348 = sbr.rel (%p346) target = $region36
        $region35: #{tpu_custom_call.1} parent=23 // pred_region
          %s349 = sand.u32 %s26, 1
          %s350 = scalar_lea.sflag [#allocation11], %s349
          %s351 = sand.u32 %s109, 1
          %s352 = smul.addr %s351, 16
          %s353 = scalar_lea.vmem [#allocation10], %s352
          %355 = vsyncadd %s350, 0
          %s356 = smul.addr %s26, 4
          %s357 = smul.addr %s356, 4
          %s358 = scalar_lea.hbm %s3, %s357
          %s359 = sshll.u32 %s358, 4
          %s360 = int_to_ptr.hbm [resolvable:$true] %s359
          %s361 = sshll.u32 %s353, 4
          %s362 = int_to_ptr.vmem [resolvable:$true] %s361
          %367 = dma.hbm_to_vmem [thread:$0]  %s360, 256, %s362, %s350, 64, 64, 4
        $region36: #{tpu_custom_call.1} parent=23 // pred_fallthru
          _
        // Predicated region
        $region37: #{tpu_custom_call.1} parent=23 // pred_check
          %p368 = pneg %p145
        $region38: #{tpu_custom_call.1} parent=23 // pred_check_branch
          %370 = sbr.rel (%p368) target = $region40
        $region39: #{tpu_custom_call.1} parent=23 // pred_region
          %s371 = sand.u32 %s26, 1
          %s372 = scalar_lea.sflag [#allocation11], %s371
          %s373 = sand.u32 %s135, 1
          %s374 = scalar_lea.vmem [#allocation12], %s373
          %376 = vsyncadd %s372, 0
          %s377 = scalar_lea.hbm %s4, %s26
          %s379 = sshll.u32 %s377, 4
          %s380 = int_to_ptr.hbm [resolvable:$true] %s379
          %s381 = sshll.u32 %s374, 4
          %s382 = int_to_ptr.vmem [resolvable:$true] %s381
          %384 = dma.hbm_to_vmem [thread:$0]  %s380, 16, %s382, %s372
        $region40: #{tpu_custom_call.1} parent=23 // pred_fallthru
          _
        // Predicated region
        $region41: #{tpu_custom_call.1} parent=23 // pred_check
          %p385 = pneg %p171
        $region42: #{tpu_custom_call.1} parent=23 // pred_check_branch
          %387 = sbr.rel (%p385) target = $region44
        $region43: #{tpu_custom_call.1} parent=23 // pred_region
          %p388 = scmp.lt.s32.totalorder %s26, 3
          %s389 = scalar_select %p388, %s26, 3
          %s390 = scalar_lea.vmem %s5, %s389
        $region44: #{tpu_custom_call.1} parent=23 // pred_fallthru
          _
        // Predicated region
        $region45: #{tpu_custom_call.1} parent=23 // pred_check
          %p391 = pneg %p197
        $region46: #{tpu_custom_call.1} parent=23 // pred_check_branch
          %393 = sbr.rel (%p391) target = $region48
        $region47: #{tpu_custom_call.1} parent=23 // pred_region
          %s394 = sand.u32 %s26, 1
          %s395 = scalar_lea.sflag [#allocation14], %s394
          %s396 = sand.u32 %s187, 1
          %s397 = scalar_lea.vmem [#allocation13], %s396
          %399 = vsyncadd %s395, 0
          %s400 = scalar_lea.hbm %s6, %s26
          %s402 = sshll.u32 %s400, 4
          %s403 = int_to_ptr.hbm [resolvable:$true] %s402
          %s404 = sshll.u32 %s397, 4
          %s405 = int_to_ptr.vmem [resolvable:$true] %s404
          %407 = dma.hbm_to_vmem [thread:$0]  %s403, 16, %s405, %s395
        $region48: #{tpu_custom_call.1} parent=23 // pred_fallthru
          _
        // Predicated region
        $region49: #{tpu_custom_call.1} parent=23 // pred_check
          %p408 = pneg %p223
        $region50: #{tpu_custom_call.1} parent=23 // pred_check_branch
          %410 = sbr.rel (%p408) target = $region52
        $region51: #{tpu_custom_call.1} parent=23 // pred_region
          %s411 = sand.u32 %s26, 1
          %s412 = scalar_lea.sflag [#allocation14], %s411
          %s413 = sand.u32 %s213, 1
          %s414 = smul.addr %s413, 16
          %s415 = scalar_lea.vmem [#allocation15], %s414
          %417 = vsyncadd %s412, 0
          %s418 = smul.addr %s26, 4
          %s419 = smul.addr %s418, 4
          %s420 = scalar_lea.hbm %s7, %s419
          %s421 = sshll.u32 %s420, 4
          %s422 = int_to_ptr.hbm [resolvable:$true] %s421
          %s423 = sshll.u32 %s415, 4
          %s424 = int_to_ptr.vmem [resolvable:$true] %s423
          %429 = dma.hbm_to_vmem [thread:$0]  %s422, 256, %s424, %s412, 64, 64, 4
        $region52: #{tpu_custom_call.1} parent=23 // pred_fallthru
          _
      $region24: #{tpu_custom_call.1} parent=5 // pred_fallthru
        _
      %p430 = scmp.le.s32.totalorder 1, %s26
      %p431 = scmp.lt.s32.totalorder %s26, 5
      %p432 = pnand %p430, %p431
      %p433 = pneg %p432
      // Predicated region
      $region53: #{tpu_custom_call.1} parent=5 // pred_check
        _
      $region54: #{tpu_custom_call.1} parent=5 // pred_check_branch
        %435 = sbr.rel (%p432) target = $region56
      $region55: #{tpu_custom_call.1} parent=5 // pred_region
        %s436 = ssub.s32 %s26, 1
        // Predicated region
        $region57: #{tpu_custom_call.1} parent=55 // pred_check
          %p437 = pneg %p47
        $region58: #{tpu_custom_call.1} parent=55 // pred_check_branch
          %439 = sbr.rel (%p437) target = $region60
        $region59: #{tpu_custom_call.1} parent=55 // pred_region
          %441 = dma.done [#allocation5], 256
        $region60: #{tpu_custom_call.1} parent=55 // pred_fallthru
          _
        %s442 = sand.u32 %s31, 1
        %s443 = scalar_lea.sflag [#allocation8], %s442
        %s444 = sand.u32 %s60, 1
        %s445 = smul.addr %s444, 16
        %s446 = scalar_lea.vmem [#allocation7], %s445
        // Predicated region
        $region61: #{tpu_custom_call.1} parent=55 // pred_check
          %p447 = pneg %p73
        $region62: #{tpu_custom_call.1} parent=55 // pred_check_branch
          %449 = sbr.rel (%p447) target = $region64
        $region63: #{tpu_custom_call.1} parent=55 // pred_region
          %451 = dma.done %s443, 256
        $region64: #{tpu_custom_call.1} parent=55 // pred_fallthru
          _
        %s452 = sand.u32 %s31, 1
        %s453 = scalar_lea.sflag [#allocation8], %s452
        %s454 = sand.u32 %s86, 1
        %s455 = scalar_lea.vmem [#allocation9], %s454
        // Predicated region
        $region65: #{tpu_custom_call.1} parent=55 // pred_check
          %p456 = pneg %p99
        $region66: #{tpu_custom_call.1} parent=55 // pred_check_branch
          %458 = sbr.rel (%p456) target = $region68
        $region67: #{tpu_custom_call.1} parent=55 // pred_region
          %460 = dma.done %s453, 16
        $region68: #{tpu_custom_call.1} parent=55 // pred_fallthru
          _
        %s461 = sand.u32 %s31, 1
        %s462 = scalar_lea.sflag [#allocation11], %s461
        %s463 = sand.u32 %s112, 1
        %s464 = smul.addr %s463, 16
        %s465 = scalar_lea.vmem [#allocation10], %s464
        // Predicated region
        $region69: #{tpu_custom_call.1} parent=55 // pred_check
          %p466 = pneg %p125
        $region70: #{tpu_custom_call.1} parent=55 // pred_check_branch
          %468 = sbr.rel (%p466) target = $region72
        $region71: #{tpu_custom_call.1} parent=55 // pred_region
          %470 = dma.done %s462, 256
        $region72: #{tpu_custom_call.1} parent=55 // pred_fallthru
          _
        %s471 = sand.u32 %s31, 1
        %s472 = scalar_lea.sflag [#allocation11], %s471
        %s473 = sand.u32 %s138, 1
        %s474 = scalar_lea.vmem [#allocation12], %s473
        // Predicated region
        $region73: #{tpu_custom_call.1} parent=55 // pred_check
          %p475 = pneg %p151
        $region74: #{tpu_custom_call.1} parent=55 // pred_check_branch
          %477 = sbr.rel (%p475) target = $region76
        $region75: #{tpu_custom_call.1} parent=55 // pred_region
          %479 = dma.done %s472, 16
        $region76: #{tpu_custom_call.1} parent=55 // pred_fallthru
          _
        %s480 = sand.u32 %s31, 1
        %s481 = scalar_lea.sflag [#allocation14], %s480
        %s482 = sand.u32 %s190, 1
        %s483 = scalar_lea.vmem [#allocation13], %s482
        // Predicated region
        $region77: #{tpu_custom_call.1} parent=55 // pred_check
          %p484 = pneg %p203
        $region78: #{tpu_custom_call.1} parent=55 // pred_check_branch
          %486 = sbr.rel (%p484) target = $region80
        $region79: #{tpu_custom_call.1} parent=55 // pred_region
          %488 = dma.done %s481, 16
        $region80: #{tpu_custom_call.1} parent=55 // pred_fallthru
          _
        %s489 = sand.u32 %s31, 1
        %s490 = scalar_lea.sflag [#allocation14], %s489
        %s491 = sand.u32 %s216, 1
        %s492 = smul.addr %s491, 16
        %s493 = scalar_lea.vmem [#allocation15], %s492
        // Predicated region
        $region81: #{tpu_custom_call.1} parent=55 // pred_check
          %p494 = pneg %p229
        $region82: #{tpu_custom_call.1} parent=55 // pred_check_branch
          %496 = sbr.rel (%p494) target = $region84
        $region83: #{tpu_custom_call.1} parent=55 // pred_region
          %498 = dma.done %s490, 256
        $region84: #{tpu_custom_call.1} parent=55 // pred_fallthru
          _
        %p499 = pneg %p47
        %p500 = pneg %p44
        %s501 = sand.u32 %s31, 1
        %s502 = scalar_lea.sflag [#allocation8], %s501
        %s503 = sand.u32 %s60, 1
        %s504 = smul.addr %s503, 16
        %s505 = scalar_lea.vmem [#allocation7], %s504
        %p506 = pneg %p73
        %p507 = pneg %p70
        %s508 = sand.u32 %s31, 1
        %s509 = scalar_lea.sflag [#allocation8], %s508
        %s510 = sand.u32 %s86, 1
        %s511 = scalar_lea.vmem [#allocation9], %s510
        %p512 = pneg %p99
        %p513 = pneg %p96
        %s514 = sand.u32 %s31, 1
        %s515 = scalar_lea.sflag [#allocation11], %s514
        %s516 = sand.u32 %s112, 1
        %s517 = smul.addr %s516, 16
        %s518 = scalar_lea.vmem [#allocation10], %s517
        %p519 = pneg %p125
        %p520 = pneg %p122
        %s521 = sand.u32 %s31, 1
        %s522 = scalar_lea.sflag [#allocation11], %s521
        %s523 = sand.u32 %s138, 1
        %s524 = scalar_lea.vmem [#allocation12], %s523
        %p525 = pneg %p151
        %p526 = pneg %p148
        %p527 = scmp.lt.s32.totalorder %s31, 3
        %s528 = scalar_select %p527, %s31, 3
        %s529 = scalar_lea.vmem %s5, %s528
        %p530 = pneg %p177
        %p531 = pneg %p174
        %s532 = sand.u32 %s31, 1
        %s533 = scalar_lea.sflag [#allocation14], %s532
        %s534 = sand.u32 %s190, 1
        %s535 = scalar_lea.vmem [#allocation13], %s534
        %p536 = pneg %p203
        %p537 = pneg %p200
        %s538 = sand.u32 %s31, 1
        %s539 = scalar_lea.sflag [#allocation14], %s538
        %s540 = sand.u32 %s216, 1
        %s541 = smul.addr %s540, 16
        %s542 = scalar_lea.vmem [#allocation15], %s541
        %p543 = pneg %p229
        %p544 = pneg %p226
        %p545 = pneg %p250
        %p546 = pneg %p247
        %p547 = pneg %p271
        %p548 = pneg %p268
        %p549 = scmp.lt.s32.totalorder %s31, 3
        %s550 = scalar_select %p549, %s31, 3
        %s551 = scalar_lea.vmem %s5, %s550
        %p553 = scmp.eq.s32.totalorder %s31, 0
        // Predicated region
        $region85: #{tpu_custom_call.1} parent=55 // pred_check
          %p554 = pneg %p553
        $region86: #{tpu_custom_call.1} parent=55 // pred_check_branch
          %556 = sbr.rel (%p554) target = $region88
        $region87: #{tpu_custom_call.1} parent=55 // pred_region
          %v557 = vld [vmem:[#allocation4] sm:$0xff]
          %v558 = vld [vmem:[#allocation4 + $0x8] sm:$0xff]
          %vm559 = vcmask 261120
          %560 = vst.msk [vmem:[#allocation2] sm:$0xff] %vm559, %v557
          %561 = vst.msk [vmem:[#allocation2 + $0x8] sm:$0xff] %vm559, %v558
          %v562 = vpack.c.bf16 %v557, %v557
          %v563 = vpack.c.bf16 %v558, %v558
          %vm564 = vcmask 257024
          %565 = vst.msk [vmem:[#allocation3] sm:$0xf] %vm564, %v562
          %566 = vst.msk [vmem:[#allocation3 + $0x4] sm:$0xf] %vm564, %v563
          %v567 = vld [vmem:[%s8] sm:$0x1]
          %v569 = vperm.slane %v567, 0
          %571 = vst [vmem:[#allocation16] sm:$0xff] %v569
          %572 = vst [vmem:[#allocation16 + $0x8] sm:$0xff] %v569
        $region88: #{tpu_custom_call.1} parent=55 // pred_fallthru
          _
        %v573 = vld [vmem:[#allocation2] sm:$0xff]
        %v574 = vld [vmem:[#allocation2 + $0x8] sm:$0xff]
        %v575 = vld [vmem:[#allocation3] sm:$0xf]
        %v576 = vld [vmem:[#allocation3 + $0x4] sm:$0xf]
        %v577 = vld [vmem:[%s446] sm:$0xf]
        %v578 = vld [vmem:[%s446 + $0x4] sm:$0xf]
        %v579 = vld [vmem:[%s446 + $0x8] sm:$0xf]
        %v580 = vld [vmem:[%s446 + $0xc] sm:$0xf]
        %v581 = vld [vmem:[%s455] sm:$0x1]
        %v583 = vperm.slane %v581, 0
        %v587 = vunpack.c.l.b16 %v575
        %v588 = vunpack.c.l.b16 %v576
        %v589 = vpack.c.b16 %v588, %v587
        %v594 = vunpack.c.l.b16 %v577
        %v595 = vunpack.c.l.b16 %v578
        %v596 = vunpack.c.l.b16 %v579
        %v597 = vunpack.c.l.b16 %v580
        %v598 = vpack.c.b16 %v595, %v594
        %v599 = vpack.c.b16 %v597, %v596
        %vm602 = vcmask 261120
        %v604 = vsel %vm602, %v589, 0
        %606 = vmatpush.bf16.msra.mxu0 0
        %607 = vmatpush.bf16.msra.mxu0 0
        %608 = vmatpush.bf16.msra.mxu0 0
        %609 = vmatpush.bf16.msra.mxu0 0
        %610 = vmatpush.bf16.msra.mxu0 0
        %611 = vmatpush.bf16.msra.mxu0 0
        %612 = vmatpush.bf16.msra.mxu0 %v599
        %613 = vmatpush.bf16.msra.mxu0 %v598
        %614 = vmatmul.bf16.gmra.mxu0 %v604
        %v615 = vpop.f32.mrf.mxu0
        %v616 = vadd.f32 %v583, %v615
        %v617 = vpop.f32.mrf.mxu0
        %v618 = vadd.f32 %v583, %v617
        %619 = vdwg.mxu0
        %v620 = vpack.c.bf16 %v616, %v616
        %v621 = vpack.c.bf16 %v618, %v618
        %v623 = vunpack.c.l.b16 %v620
        %v624 = vpack.c.b16 %v623, %v623
        %625 = vrot.lane.b32.xlu0 %v624, 120
        %v626 = vpop.permute.xlu0 %625
        %vm627 = vcmask 64512
        %v629 = vsel %vm627, %v620, 0
        %v632 = vsel %vm627, %v626, 0
        %634 = vmatpush.bf16.xpose.msra.mxu0 0
        %635 = vmatpush.bf16.xpose.msra.mxu0 0
        %636 = vmatpush.bf16.xpose.msra.mxu0 0
        %637 = vmatpush.bf16.xpose.msra.mxu0 0
        %638 = vmatpush.bf16.xpose.msra.mxu0 0
        %639 = vmatpush.bf16.xpose.msra.mxu0 0
        %640 = vmatpush.bf16.xpose.msra.mxu0 0
        %641 = vmatpush.bf16.xpose.msra.mxu0 %v632
        %642 = vmatmul.bf16.gmra.mxu0 %v629
        %v643 = vpop.f32.mrf.mxu0
        %v644 = vadd.f32 0.0, %v643
        %v645 = vpop.f32.mrf.mxu0
        %646 = vdwg.mxu0
        %v648 = vunpack.c.l.b16 %v621
        %v649 = vpack.c.b16 %v648, %v648
        %650 = vrot.lane.b32.xlu0 %v649, 120
        %v651 = vpop.permute.xlu0 %650
        %v653 = vsel %vm627, %v621, 0
        %v656 = vsel %vm627, %v651, 0
        %658 = vmatpush.bf16.xpose.msra.mxu0 0
        %659 = vmatpush.bf16.xpose.msra.mxu0 0
        %660 = vmatpush.bf16.xpose.msra.mxu0 0
        %661 = vmatpush.bf16.xpose.msra.mxu0 0
        %662 = vmatpush.bf16.xpose.msra.mxu0 0
        %663 = vmatpush.bf16.xpose.msra.mxu0 0
        %664 = vmatpush.bf16.xpose.msra.mxu0 0
        %665 = vmatpush.bf16.xpose.msra.mxu0 %v656
        %666 = vmatmul.bf16.gmra.mxu0 %v653
        %v667 = vpop.f32.mrf.mxu0
        %v668 = vadd.f32 0.0, %v667
        %v669 = vpop.f32.mrf.mxu0
        %670 = vdwg.mxu0
        %v671 = vsel %vm627, %v644, -inf
        %v672 = vrot.slane %v671, 4
        %v673 = vmax.f32 %v671, %v672
        %v674 = vrot.slane %v673, 2
        %v675 = vmax.f32 %v673, %v674
        %v676 = vrot.slane %v675, 1
        %v677 = vmax.f32 %v675, %v676
        %v678 = vsel %vm627, %v668, -inf
        %v679 = vrot.slane %v678, 4
        %v680 = vmax.f32 %v678, %v679
        %v681 = vrot.slane %v680, 2
        %v682 = vmax.f32 %v680, %v681
        %v683 = vrot.slane %v682, 1
        %v684 = vmax.f32 %v682, %v683
        %v685 = vsub.f32 %v644, %v677
        %v686 = vsub.f32 %v668, %v684
        %v687 = vmul.f32 %v685, 1.442695
        %v688 = vpow.pop %v687
        %v689 = vmul.f32 %v686, 1.442695
        %v690 = vpow.pop %v689
        %v691 = vsel %vm627, %v688, 0.0
        %v692 = vrot.slane %v691, 4
        %v693 = vadd.f32 %v691, %v692
        %v694 = vrot.slane %v693, 2
        %v695 = vadd.f32 %v693, %v694
        %v696 = vrot.slane %v695, 1
        %v697 = vadd.f32 %v695, %v696
        %v698 = vsel %vm627, %v690, 0.0
        %v699 = vrot.slane %v698, 4
        %v700 = vadd.f32 %v698, %v699
        %v701 = vrot.slane %v700, 2
        %v702 = vadd.f32 %v700, %v701
        %v703 = vrot.slane %v702, 1
        %v704 = vadd.f32 %v702, %v703
        %v705 = vrcp.pop %v697
        %v706 = vmul.f32 %v697, %v705
        %v707 = vsub.f32 1.0, %v706
        %v708 = vmul.f32 %v705, %v707
        %v709 = vadd.f32 %v705, %v708
        %vm710 = vweird.f32 %v697
        %vm711 = vweird.f32 %v705
        %vm712 = vmor %vm710, %vm711
        %v713 = vsel %vm712, %v705, %v709
        %v714 = vand.u32 2147483647, %v697
        %vm715 = vcmp.eq.f32.partialorder %v714, 8.507059e+37
        %v716 = vand.u32 %v697, 2147483648
        %v717 = vor.u32 1.1754944e-38, %v716
        %v718 = vsel %vm715, %v717, %v713
        %v719 = vmul.f32 %v688, %v718
        %v720 = vrcp.pop %v704
        %v721 = vmul.f32 %v704, %v720
        %v722 = vsub.f32 1.0, %v721
        %v723 = vmul.f32 %v720, %v722
        %v724 = vadd.f32 %v720, %v723
        %vm725 = vweird.f32 %v704
        %vm726 = vweird.f32 %v720
        %vm727 = vmor %vm725, %vm726
        %v728 = vsel %vm727, %v720, %v724
        %v729 = vand.u32 2147483647, %v704
        %vm730 = vcmp.eq.f32.partialorder %v729, 8.507059e+37
        %v731 = vand.u32 %v704, 2147483648
        %v732 = vor.u32 1.1754944e-38, %v731
        %v733 = vsel %vm730, %v732, %v728
        %v734 = vmul.f32 %v690, %v733
        %v735 = vsel %vm627, %v719, 0.0
        %736 = vadd.xlane.f32.xlu0 %v735
        %v737 = vpop.xlane.xlu0 %736
        %v738 = vsel %vm627, %v734, 0.0
        %739 = vadd.xlane.f32.xlu0 %v738
        %v740 = vpop.xlane.xlu0 %739
        %v741 = vrcp.pop %v737
        %v742 = vrcp.pop %v740
        %v743 = vmul.f32 %v719, %v741
        %v744 = vmul.f32 %v734, %v742
        %v745 = vpack.c.bf16 %v743, %v743
        %v746 = vpack.c.bf16 %v744, %v744
        %747 = vrot.lane.b32.xlu0 %v624, 112
        %v748 = vpop.permute.xlu0 %747
        %v750 = vsel %vm627, %v745, 0
        %vm752 = vcmask 1043456
        %v754 = vsel %vm752, %v748, 0
        %756 = vmatpush.bf16.msra.mxu0 0
        %757 = vmatpush.bf16.msra.mxu0 0
        %758 = vmatpush.bf16.msra.mxu0 0
        %759 = vmatpush.bf16.msra.mxu0 0
        %760 = vmatpush.bf16.msra.mxu0 0
        %761 = vmatpush.bf16.msra.mxu0 0
        %762 = vmatpush.bf16.msra.mxu0 0
        %763 = vmatpush.bf16.msra.mxu0 %v754
        %764 = vmatmul.bf16.gmra.mxu0 %v750
        %v765 = vpop.f32.mrf.mxu0
        %v766 = vadd.f32 0.0, %v765
        %v767 = vpop.f32.mrf.mxu0
        %768 = vdwg.mxu0
        %769 = vrot.lane.b32.xlu0 %v649, 112
        %v770 = vpop.permute.xlu0 %769
        %v772 = vsel %vm627, %v746, 0
        %v775 = vsel %vm752, %v770, 0
        %777 = vmatpush.bf16.msra.mxu0 0
        %778 = vmatpush.bf16.msra.mxu0 0
        %779 = vmatpush.bf16.msra.mxu0 0
        %780 = vmatpush.bf16.msra.mxu0 0
        %781 = vmatpush.bf16.msra.mxu0 0
        %782 = vmatpush.bf16.msra.mxu0 0
        %783 = vmatpush.bf16.msra.mxu0 0
        %784 = vmatpush.bf16.msra.mxu0 %v775
        %785 = vmatmul.bf16.gmra.mxu0 %v772
        %v786 = vpop.f32.mrf.mxu0
        %v787 = vadd.f32 0.0, %v786
        %v788 = vpop.f32.mrf.mxu0
        %789 = vdwg.mxu0
        %v790 = vsub.f32 %v573, %v766
        %v791 = vsub.f32 %v574, %v787
        %v792 = vpack.c.bf16 %v791, %v790
        %v793 = vld [vmem:[%s465] sm:$0xf]
        %v794 = vld [vmem:[%s465 + $0x4] sm:$0xf]
        %v795 = vld [vmem:[%s465 + $0x8] sm:$0xf]
        %v796 = vld [vmem:[%s465 + $0xc] sm:$0xf]
        %v797 = vld [vmem:[%s474] sm:$0x1]
        %v799 = vperm.slane %v797, 0
        %v805 = vunpack.c.l.b16 %v793
        %v806 = vunpack.c.l.b16 %v794
        %v807 = vunpack.c.l.b16 %v795
        %v808 = vunpack.c.l.b16 %v796
        %v809 = vpack.c.b16 %v806, %v805
        %v810 = vpack.c.b16 %v808, %v807
        %v814 = vsel %vm602, %v792, 0
        %816 = vmatpush.bf16.msra.mxu0 0
        %817 = vmatpush.bf16.msra.mxu0 0
        %818 = vmatpush.bf16.msra.mxu0 0
        %819 = vmatpush.bf16.msra.mxu0 0
        %820 = vmatpush.bf16.msra.mxu0 0
        %821 = vmatpush.bf16.msra.mxu0 0
        %822 = vmatpush.bf16.msra.mxu0 %v810
        %823 = vmatpush.bf16.msra.mxu0 %v809
        %824 = vmatmul.bf16.gmra.mxu0 %v814
        %v825 = vpop.f32.mrf.mxu0
        %v826 = vadd.f32 %v799, %v825
        %v827 = vpop.f32.mrf.mxu0
        %v828 = vadd.f32 %v799, %v827
        %829 = vdwg.mxu0
        %v830 = vsel %vm602, %v826, 0.0
        %v831 = vsel %vm602, %v828, 0.0
        %v832 = vadd.f32 %v830, %v831
        %v833 = vrot.slane %v832, 4
        %v834 = vadd.f32 %v832, %v833
        %v835 = vrot.slane %v834, 2
        %v836 = vadd.f32 %v834, %v835
        %v837 = vrot.slane %v836, 1
        %v838 = vadd.f32 %v836, %v837
        %v839 = vrcp.pop 16.0
        %v840 = vmul.f32 16.0, %v839
        %v841 = vsub.f32 1.0, %v840
        %v842 = vmul.f32 %v839, %v841
        %v843 = vadd.f32 %v839, %v842
        %vm844 = vweird.f32 %v839
        %v845 = vsel %vm844, %v839, %v843
        %v846 = vmul.f32 %v838, %v845
        %v847 = vsub.f32 %v826, %v846
        %v848 = vsub.f32 %v828, %v846
        %v849 = vmul.f32 %v847, %v847
        %v850 = vmul.f32 %v848, %v848
        %v851 = vsel %vm602, %v849, 0.0
        %v852 = vsel %vm602, %v850, 0.0
        %v853 = vadd.f32 %v851, %v852
        %v854 = vrot.slane %v853, 4
        %v855 = vadd.f32 %v853, %v854
        %v856 = vrot.slane %v855, 2
        %v857 = vadd.f32 %v855, %v856
        %v858 = vrot.slane %v857, 1
        %v859 = vadd.f32 %v857, %v858
        %v860 = vmul.f32 %v859, %v845
        %v861 = vadd.f32 %v860, 1e-05
        %v862 = vrsqrt.pop %v861
        %v863 = vmul.f32 %v862, %v861
        %v864 = vmul.f32 %v863, %v862
        %v865 = vmul.f32 0.5, %v864
        %v866 = vsub.f32 1.5, %v865
        %v867 = vmul.f32 %v862, %v866
        %vm868 = vweird.f32 %v861
        %vm869 = vweird.f32 %v862
        %vm870 = vmor %vm868, %vm869
        %v871 = vsel %vm870, %v862, %v867
        %v872 = vmul.f32 %v847, %v871
        %v873 = vmul.f32 %v848, %v871
        %v874 = vld [vmem:[%s551] sm:$0x1]
        %v876 = vperm.slane %v874, 0
        %v878 = vmul.f32 %v872, %v876
        %v879 = vmul.f32 %v873, %v876
        %v880 = vld [vmem:[%s483] sm:$0x1]
        %v882 = vperm.slane %v880, 0
        %v884 = vadd.f32 %v878, %v882
        %v885 = vadd.f32 %v879, %v882
        %v886 = vmax.f32 %v884, 0.0
        %v887 = vmax.f32 %v885, 0.0
        %v888 = vadd.f32 %v886, %v766
        %v889 = vadd.f32 %v887, %v787
        %v890 = vpack.c.bf16 %v888, %v888
        %v891 = vpack.c.bf16 %v889, %v889
        %892 = vst.msk [vmem:[#allocation2] sm:$0xff] %vm602, %v888
        %893 = vst.msk [vmem:[#allocation2 + $0x8] sm:$0xff] %vm602, %v889
        %vm894 = vcmask 257024
        %895 = vst.msk [vmem:[#allocation3] sm:$0xf] %vm894, %v890
        %896 = vst.msk [vmem:[#allocation3 + $0x4] sm:$0xf] %vm894, %v891
        %v897 = vld [vmem:[%s493] sm:$0xf]
        %v898 = vld [vmem:[%s493 + $0x4] sm:$0xf]
        %v899 = vld [vmem:[%s493 + $0x8] sm:$0xf]
        %v900 = vld [vmem:[%s493 + $0xc] sm:$0xf]
        %v903 = vunpack.c.l.b16 %v890
        %v904 = vunpack.c.l.b16 %v891
        %v905 = vpack.c.b16 %v904, %v903
        %v910 = vunpack.c.l.b16 %v897
        %v911 = vunpack.c.l.b16 %v898
        %v912 = vunpack.c.l.b16 %v899
        %v913 = vunpack.c.l.b16 %v900
        %v914 = vpack.c.b16 %v911, %v910
        %v915 = vpack.c.b16 %v913, %v912
        %v919 = vsel %vm602, %v905, 0
        %921 = vmatpush.bf16.msra.mxu0 0
        %922 = vmatpush.bf16.msra.mxu0 0
        %923 = vmatpush.bf16.msra.mxu0 0
        %924 = vmatpush.bf16.msra.mxu0 0
        %925 = vmatpush.bf16.msra.mxu0 0
        %926 = vmatpush.bf16.msra.mxu0 0
        %927 = vmatpush.bf16.msra.mxu0 %v915
        %928 = vmatpush.bf16.msra.mxu0 %v914
        %929 = vmatmul.bf16.gmra.mxu0 %v919
        %v930 = vpop.f32.mrf.mxu0
        %v931 = vadd.f32 0.0, %v930
        %v932 = vpop.f32.mrf.mxu0
        %v933 = vadd.f32 0.0, %v932
        %934 = vdwg.mxu0
        %v935 = vld [vmem:[#allocation16] sm:$0xff]
        %v936 = vld [vmem:[#allocation16 + $0x8] sm:$0xff]
        %v937 = vadd.f32 %v935, %v931
        %v938 = vadd.f32 %v936, %v933
        %939 = vst [vmem:[#allocation16] sm:$0xff] %v937
        %940 = vst [vmem:[#allocation16 + $0x8] sm:$0xff] %v938
        // Predicated region
        $region89: #{tpu_custom_call.1} parent=55 // pred_check
          %p941 = pneg %p268
        $region90: #{tpu_custom_call.1} parent=55 // pred_check_branch
          %943 = sbr.rel (%p941) target = $region92
        $region91: #{tpu_custom_call.1} parent=55 // pred_region
          %945 = vsyncadd [#allocation6], 0
          %s946 = sshll.u32 [#allocation16], 4
          %s947 = int_to_ptr.vmem [resolvable:$true] %s946
          %s948 = sshll.u32 %s9, 4
          %s949 = int_to_ptr.hbm [resolvable:$true] %s948
          %954 = dma.vmem_to_hbm [thread:$0]  %s947, 256, %s949, [#allocation6], 128, 128, 8
        $region92: #{tpu_custom_call.1} parent=55 // pred_fallthru
          _
        // Predicated region
        $region93: #{tpu_custom_call.1} parent=55 // pred_check
          %p955 = pneg %p268
        $region94: #{tpu_custom_call.1} parent=55 // pred_check_branch
          %957 = sbr.rel (%p955) target = $region96
        $region95: #{tpu_custom_call.1} parent=55 // pred_region
          %959 = dma.done [#allocation6], 256
        $region96: #{tpu_custom_call.1} parent=55 // pred_fallthru
          _
      $region56: #{tpu_custom_call.1} parent=5 // pred_fallthru
        _
      %p960 = scmp.le.s32.totalorder 2, %s26
      // Predicated region
      $region97: #{tpu_custom_call.1} parent=5 // pred_check
        %p961 = pneg %p960
      $region98: #{tpu_custom_call.1} parent=5 // pred_check_branch
        %963 = sbr.rel (%p961) target = $region100
      $region99: #{tpu_custom_call.1} parent=5 // pred_region
        %s964 = ssub.s32 %s26, 2
      $region100: #{tpu_custom_call.1} parent=5 // pred_fallthru
        _
    $region6: #{tpu_custom_call.1} parent=1 // loop_footer
      %s30 = sadd.s32 1, %s26
    $region7: #{tpu_custom_call.1} parent=1 // loop_footer_branch
      %25 = sbr.rel target = $region3
    $region8: #{tpu_custom_call.1} parent=1 // loop_exit
      _
    %965 = vsyncpa [#allocation5], 1
    %s966 = scalar_lea.sflag [#allocation5], 1
    %967 = vsyncpa %s966, 1
    %968 = vsyncpa [#allocation8], 1
    %s969 = scalar_lea.sflag [#allocation8], 1
    %970 = vsyncpa %s969, 1
    %971 = vsyncpa [#allocation11], 1
    %s972 = scalar_lea.sflag [#allocation11], 1
    %973 = vsyncpa %s972, 1
    %974 = vsyncpa [#allocation14], 1
    %s975 = scalar_lea.sflag [#allocation14], 1
    %976 = vsyncpa %s975, 1
    %977 = vsyncpa [#allocation6], 1
    %s978 = scalar_lea.sflag [#allocation6], 1
    %979 = vsyncpa %s978, 1

</llo_original>
